<compile_context>
chip_gen: v6e
topology: v6e:2x2x1
jax: 0.10.0
libtpu: 0.0.40
codegen_flags: <defaults>
</compile_context>

<pallas_src>
import jax
import jax.numpy as jnp
from jax import lax
from jax.experimental import pallas as pl
from jax.experimental.pallas import tpu as pltpu

_LANE = 128
_TARGET_BLOCK_ELEMS = 512 * 1024     # ~2 MiB of f32 per input block per buffer
_MAX_RAGGED_LANES = 32 * 1024        # ragged zero-copy view allowed up to this lane width


def _cdiv(a, b):
    return -(-a // b)


def _smooth_l1(p, g):
    # PyTorch nn.SmoothL1Loss, beta=1.0: 0.5*d^2 if |d| < 1 else |d| - 0.5
    d = p - g
    ad = jnp.abs(d)
    return jnp.where(ad < 1.0, 0.5 * d * d, ad - 0.5)


def _make_kernels(*, tile_rows, lanes, rows, nsteps, has_tail, acc_rows, mask_is_bool):
    """Build the unmasked / masked kernel bodies for a fixed (static) tiling plan."""

    def reduce_tile(x):
        # (tile_rows, lanes) f32 -> (acc_rows, lanes) partial sum.
        if acc_rows == 8:
            # Sublane-aligned split of the leading dim: pure vreg adds (VALU only).
            return x.reshape(tile_rows // 8, 8, lanes).sum(axis=0)
        return jnp.sum(x, axis=0, keepdims=True)

    def row_valid(i):
        row = i * tile_rows + lax.broadcasted_iota(jnp.int32, (tile_rows, lanes), 0)
        return row < rows

    def unmasked_kernel(p_ref, g_ref, loss_ref):
        i = pl.program_id(0)

        @pl.when(i == 0)
        def _init():
            loss_ref[...] = jnp.zeros_like(loss_ref)

        def accumulate(is_tail):
            elem = _smooth_l1(p_ref[...].astype(jnp.float32),
                              g_ref[...].astype(jnp.float32))
            if is_tail:
                # Select (never multiply): garbage / NaN in the partial block's
                # out-of-range rows must not reach the accumulator.
                elem = jnp.where(row_valid(i), elem, 0.0)
            loss_ref[...] += reduce_tile(elem)

        if has_tail:
            last = nsteps - 1

            @pl.when(i != last)
            def _full():
                accumulate(False)

            @pl.when(i == last)
            def _tail():
                accumulate(True)
        else:
            accumulate(False)

    def masked_kernel(p_ref, g_ref, m_ref, loss_ref, cnt_ref):
        i = pl.program_id(0)

        @pl.when(i == 0)
        def _init():
            loss_ref[...] = jnp.zeros_like(loss_ref)
            cnt_ref[...] = jnp.zeros_like(cnt_ref)

        def accumulate(is_tail):
            elem = _smooth_l1(p_ref[...].astype(jnp.float32),
                              g_ref[...].astype(jnp.float32))
            sel = m_ref[...] if mask_is_bool else (m_ref[...] != 0)
            if is_tail:
                sel = jnp.logical_and(sel, row_valid(i))
            # Selects, not multiplies: NaN/Inf from the partial block's garbage
            # region can never propagate (jnp.where drops the unselected branch).
            loss_ref[...] += reduce_tile(jnp.where(sel, elem, 0.0))
            cnt_ref[...] += reduce_tile(jnp.where(sel, 1.0, 0.0))

        if has_tail:
            last = nsteps - 1

            @pl.when(i != last)
            def _full():
                accumulate(False)

            @pl.when(i == last)
            def _tail():
                accumulate(True)
        else:
            accumulate(False)

    return unmasked_kernel, masked_kernel


def _plan(shape, n, max_block_elems):
    """Pick a zero-copy 2D view (rows, lanes) and the row tiling for it."""
    if n % _LANE == 0:
        rows, lanes, pad = n // _LANE, _LANE, 0                 # lane-dense, zero copy
    else:
        lanes = shape[-1] if len(shape) >= 1 else 1
        if 0 < lanes <= _MAX_RAGGED_LANES:
            rows, pad = n // lanes, 0                           # ragged, still zero copy
        else:
            # Rare fallback: ragged count AND an enormous last dim -> tail pad (copies).
            lanes = _LANE
            rows = _cdiv(n, _LANE)
            pad = rows * _LANE - n

    tile_rows = min(rows, max(1, max_block_elems // lanes))
    if tile_rows < rows:
        tile_rows = max(8, (tile_rows // 8) * 8)   # multiple of 8 (block + acc reshape)
        if tile_rows >= rows:
            tile_rows = rows
    nsteps = _cdiv(rows, tile_rows)
    has_tail = (nsteps * tile_rows) != rows
    acc_rows = 8 if tile_rows % 8 == 0 else 1
    return rows, lanes, pad, tile_rows, nsteps, has_tail, acc_rows


def reg_l1_loss(pred, gt, mask=None, *, max_block_elems=_TARGET_BLOCK_ELEMS):
    """Equivalent of RegL1Loss.forward(pred, gt, mask).

    mask (if given) must have the same shape as pred; elements where mask is
    False / zero are excluded from both the sum and the count, like
    pred[mask] / gt[mask] boolean indexing in the PyTorch module.
    """
    assert pred.shape == gt.shape, (pred.shape, gt.shape)
    n = pred.size
    if n == 0:
        return jnp.float32(0.0)
    if mask is not None:
        assert mask.shape == pred.shape, (mask.shape, pred.shape)

    rows, lanes, pad, tile_rows, nsteps, has_tail, acc_rows = _plan(
        pred.shape, n, max_block_elems)

    def as2d(x):
        flat = jnp.reshape(x, (-1,))           # bitcast, no copy
        if pad:
            flat = jnp.pad(flat, (0, pad))     # rare fallback only
        return jnp.reshape(flat, (rows, lanes))

    p2 = as2d(pred)   # native dtype; upcast to f32 inside the kernel
    g2 = as2d(gt)

    in_spec = pl.BlockSpec((tile_rows, lanes), lambda i: (i, 0))
    out_spec = pl.BlockSpec((acc_rows, lanes), lambda i: (0, 0))   # resident accumulator
    partial = jax.ShapeDtypeStruct((acc_rows, lanes), jnp.float32)
    cparams = pltpu.CompilerParams(
        dimension_semantics=("arbitrary",),        # single reduction axis
        vmem_limit_bytes=32 * 1024 * 1024,         # 2 MiB blocks x 2 inputs x 2 buffers fits easily
    )

    unmasked_kernel, masked_kernel = _make_kernels(
        tile_rows=tile_rows, lanes=lanes, rows=rows, nsteps=nsteps,
        has_tail=has_tail, acc_rows=acc_rows,
        mask_is_bool=(mask is not None and mask.dtype == jnp.bool_))

    if mask is None:
        loss_part = pl.pallas_call(
            unmasked_kernel,
            out_shape=partial,
            grid_spec=pltpu.PrefetchScalarGridSpec(
                num_scalar_prefetch=0,
                grid=(nsteps,),
                in_specs=[in_spec, in_spec],
                out_specs=out_spec,
            ),
            compiler_params=cparams,
        )(p2, g2)
        return jnp.sum(loss_part) / jnp.float32(n)

    m2 = as2d(mask)   # fed in its native dtype (bool ok) -> no extra HBM pass
    loss_part, cnt_part = pl.pallas_call(
        masked_kernel,
        out_shape=(partial, partial),
        grid_spec=pltpu.PrefetchScalarGridSpec(
            num_scalar_prefetch=0,
            grid=(nsteps,),
            in_specs=[in_spec, in_spec, in_spec],
            out_specs=(out_spec, out_spec),
        ),
        compiler_params=cparams,
    )(p2, g2, m2)

    loss = jnp.sum(loss_part)
    cnt = jnp.sum(cnt_part)
    # PyTorch: if num == 0 -> return 0
    return jnp.where(cnt > 0.0, loss / cnt, jnp.float32(0.0))


def _reference(pred, gt, mask=None):
    p = pred.astype(jnp.float32)
    g = gt.astype(jnp.float32)
    d = p - g
    ad = jnp.abs(d)
    elem = jnp.where(ad < 1.0, 0.5 * d * d, ad - 0.5)
    if mask is None:
        return jnp.sum(elem) / jnp.float32(pred.size)
    m = mask if mask.dtype == jnp.bool_ else (mask != 0)
    cnt = jnp.sum(m.astype(jnp.float32))
    loss = jnp.sum(jnp.where(m, elem, 0.0))
    return jnp.where(cnt > 0.0, loss / cnt, jnp.float32(0.0))


if __name__ == "__main__":
    key = jax.random.PRNGKey(0)
    k1, k2, k3 = jax.random.split(key, 3)

    def check(pred, gt, mask=None, tol=1e-5, **kw):
        out = jax.block_until_ready(reg_l1_loss(pred, gt, mask, **kw))
        ref = jax.block_until_ready(_reference(pred, gt, mask))
        assert jnp.allclose(out, ref, rtol=tol, atol=tol), (out, ref)

    # Base shape implied by the module's typical usage.
    B, C, H, W = 2, 4, 16, 16
    pred = jax.random.normal(k1, (B, C, H, W), dtype=jnp.float32) * 2.0
    gt = jax.random.normal(k2, (B, C, H, W), dtype=jnp.float32) * 2.0
    mask = jax.random.bernoulli(k3, p=0.5, shape=(B, C, H, W))

    check(pred, gt, mask)                    # masked, lane-dense, single block
    check(pred, gt, None)                    # mask-free variant (one less HBM stream)
    check(pred.astype(jnp.bfloat16), gt.astype(jnp.bfloat16), mask, tol=1e-4)

    out = jax.block_until_ready(reg_l1_loss(pred, gt, jnp.zeros_like(mask)))
    assert jnp.allclose(out, 0.0), out       # all-False mask -> num == 0 -> loss 0

    # Ragged element count (9102, not a multiple of 128): zero-copy (222, 41) view.
    shp = (2, 3, 37, 41)
    p_r = jax.random.normal(k1, shp, dtype=jnp.float32)
    g_r = jax.random.normal(k2, shp, dtype=jnp.float32)
    m_r = jax.random.bernoulli(k3, p=0.3, shape=shp)
    check(p_r, g_r, m_r)
    check(p_r, g_r, None)
    # Force multi-block + partial tail block on the ragged view (NaN-hazard path).
    check(p_r, g_r, m_r, max_block_elems=16 * 41)
    check(p_r, g_r, None, max_block_elems=16 * 41)

    # Lane-dense multi-block path with a partial tail block (rows=2100, tile=512).
    shp = (2, 4, 210, 160)
    p_l = jax.random.normal(k1, shp, dtype=jnp.float32)
    g_l = jax.random.normal(k2, shp, dtype=jnp.float32)
    m_l = jax.random.bernoulli(k3, p=0.5, shape=shp)
    check(p_l, g_l, m_l, max_block_elems=512 * 128)
    check(p_l, g_l, None, max_block_elems=512 * 128)
    check(p_l, g_l, m_l)                     # default (single-block) config
    check(p_l, g_l, None)

    # Float-valued mask: treated as nonzero-selects (kernel compares != 0 in place).
    check(p_l, g_l, m_l.astype(jnp.float32), max_block_elems=512 * 128)

    print("KERNEL_OK")
</pallas_src>

<mosaic_0001>
module attributes {stable_mosaic.version = 11 : i64} {
  func.func @masked_kernel(%arg0: i32, %arg1: memref<16x128xf32, #tpu.memory_space<vmem>>, %arg2: memref<16x128xf32, #tpu.memory_space<vmem>>, %arg3: memref<16x128xi32, #tpu.memory_space<vmem>>, %arg4: memref<8x128xf32, #tpu.memory_space<vmem>>, %arg5: memref<8x128xf32, #tpu.memory_space<vmem>>) attributes {dimension_semantics = [#tpu.dimension_semantics<arbitrary>], iteration_bounds = array<i64: 1>, scalar_prefetch = 0 : i64, scratch_operands = 0 : i64, tpu.core_type = #tpu.core_type<tc>, window_params = [{transform_indices = @transform_0, window_bounds = array<i64: 16, 128>}, {transform_indices = @transform_1, window_bounds = array<i64: 16, 128>}, {transform_indices = @transform_2, window_bounds = array<i64: 16, 128>}, {pipeline_mode = #tpu.pipeline_mode<synchronous>, transform_indices = @transform_3, window_bounds = array<i64: 8, 128>}, {pipeline_mode = #tpu.pipeline_mode<synchronous>, transform_indices = @transform_4, window_bounds = array<i64: 8, 128>}]} {
    %c0_i32 = arith.constant 0 : i32
    %0 = arith.cmpi eq, %arg0, %c0_i32 : i32
    %1 = arith.extui %0 : i1 to i32
    %c0_i32_0 = arith.constant 0 : i32
    %2 = arith.cmpi ne, %1, %c0_i32_0 : i32
    scf.if %2 {
      %cst_22 = arith.constant 0.000000e+00 : f32
      %32 = vector.broadcast %cst_22 : f32 to vector<8x128xf32>
      %c0_23 = arith.constant 0 : index
      %c0_24 = arith.constant 0 : index
      %33 = vector.load %arg4[%c0_23, %c0_24] : memref<8x128xf32, #tpu.memory_space<vmem>>, vector<8x128xf32>
      tpu.vector_store %arg4[%c0_23, %c0_24], %32 {strides = array<i32>} : memref<8x128xf32, #tpu.memory_space<vmem>>, vector<8x128xf32>,
      %cst_25 = arith.constant 0.000000e+00 : f32
      %34 = vector.broadcast %cst_25 : f32 to vector<8x128xf32>
      %c0_26 = arith.constant 0 : index
      %c0_27 = arith.constant 0 : index
      %35 = vector.load %arg5[%c0_26, %c0_27] : memref<8x128xf32, #tpu.memory_space<vmem>>, vector<8x128xf32>
      tpu.vector_store %arg5[%c0_26, %c0_27], %34 {strides = array<i32>} : memref<8x128xf32, #tpu.memory_space<vmem>>, vector<8x128xf32>,
    } else {
    }
    %c0 = arith.constant 0 : index
    %c0_1 = arith.constant 0 : index
    %3 = vector.load %arg1[%c0, %c0_1] : memref<16x128xf32, #tpu.memory_space<vmem>>, vector<16x128xf32>
    %c0_2 = arith.constant 0 : index
    %c0_3 = arith.constant 0 : index
    %4 = vector.load %arg2[%c0_2, %c0_3] : memref<16x128xf32, #tpu.memory_space<vmem>>, vector<16x128xf32>
    %5 = arith.subf %3, %4 : vector<16x128xf32>
    %6 = math.absf %5 : vector<16x128xf32>
    %cst = arith.constant 1.000000e+00 : f32
    %7 = vector.broadcast %cst : f32 to vector<16x128xf32>
    %8 = arith.cmpf olt, %6, %7 : vector<16x128xf32>
    %cst_4 = arith.constant 5.000000e-01 : f32
    %9 = vector.broadcast %cst_4 : f32 to vector<16x128xf32>
    %10 = arith.mulf %9, %5 : vector<16x128xf32>
    %11 = arith.mulf %10, %5 : vector<16x128xf32>
    %cst_5 = arith.constant 5.000000e-01 : f32
    %12 = vector.broadcast %cst_5 : f32 to vector<16x128xf32>
    %13 = arith.subf %6, %12 : vector<16x128xf32>
    %14 = arith.select %8, %11, %13 : vector<16x128xi1>, vector<16x128xf32>
    %c0_6 = arith.constant 0 : index
    %c0_7 = arith.constant 0 : index
    %15 = vector.load %arg3[%c0_6, %c0_7] : memref<16x128xi32, #tpu.memory_space<vmem>>, vector<16x128xi32>
    %cst_8 = arith.constant dense<0> : vector<16x128xi32>
    %16 = arith.cmpi ne, %15, %cst_8 : vector<16x128xi32>
    %c0_9 = arith.constant 0 : index
    %c0_10 = arith.constant 0 : index
    %17 = vector.load %arg4[%c0_9, %c0_10] : memref<8x128xf32, #tpu.memory_space<vmem>>, vector<8x128xf32>
    %cst_11 = arith.constant 0.000000e+00 : f32
    %18 = vector.broadcast %cst_11 : f32 to vector<16x128xf32>
    %19 = arith.select %16, %14, %18 : vector<16x128xi1>, vector<16x128xf32>
    %20 = vector.shape_cast %19 : vector<16x128xf32> to vector<2x8x128xf32>
    %cst_12 = arith.constant dense<0.000000e+00> : vector<8x128xf32>
    %21 = vector.multi_reduction <add>, %20, %cst_12 [0] : vector<2x8x128xf32> to vector<8x128xf32>
    %22 = arith.addf %17, %21 : vector<8x128xf32>
    %c0_13 = arith.constant 0 : index
    %c0_14 = arith.constant 0 : index
    %23 = vector.load %arg4[%c0_13, %c0_14] : memref<8x128xf32, #tpu.memory_space<vmem>>, vector<8x128xf32>
    tpu.vector_store %arg4[%c0_13, %c0_14], %22 {strides = array<i32>} : memref<8x128xf32, #tpu.memory_space<vmem>>, vector<8x128xf32>,
    %c0_15 = arith.constant 0 : index
    %c0_16 = arith.constant 0 : index
    %24 = vector.load %arg5[%c0_15, %c0_16] : memref<8x128xf32, #tpu.memory_space<vmem>>, vector<8x128xf32>
    %cst_17 = arith.constant 1.000000e+00 : f32
    %cst_18 = arith.constant 0.000000e+00 : f32
    %25 = vector.broadcast %cst_17 : f32 to vector<16x128xf32>
    %26 = vector.broadcast %cst_18 : f32 to vector<16x128xf32>
    %27 = arith.select %16, %25, %26 : vector<16x128xi1>, vector<16x128xf32>
    %28 = vector.shape_cast %27 : vector<16x128xf32> to vector<2x8x128xf32>
    %cst_19 = arith.constant dense<0.000000e+00> : vector<8x128xf32>
    %29 = vector.multi_reduction <add>, %28, %cst_19 [0] : vector<2x8x128xf32> to vector<8x128xf32>
    %30 = arith.addf %24, %29 : vector<8x128xf32>
    %c0_20 = arith.constant 0 : index
    %c0_21 = arith.constant 0 : index
    %31 = vector.load %arg5[%c0_20, %c0_21] : memref<8x128xf32, #tpu.memory_space<vmem>>, vector<8x128xf32>
    tpu.vector_store %arg5[%c0_20, %c0_21], %30 {strides = array<i32>} : memref<8x128xf32, #tpu.memory_space<vmem>>, vector<8x128xf32>,
    return
  }
  func.func @transform_0(%arg0: i32) -> (i32, i32) {
    %c0_i32 = arith.constant 0 : i32
    %c0_i32_0 = arith.constant 0 : i32
    return %arg0, %c0_i32 : i32, i32
  }
  func.func @transform_1(%arg0: i32) -> (i32, i32) {
    %c0_i32 = arith.constant 0 : i32
    %c0_i32_0 = arith.constant 0 : i32
    return %arg0, %c0_i32 : i32, i32
  }
  func.func @transform_2(%arg0: i32) -> (i32, i32) {
    %c0_i32 = arith.constant 0 : i32
    %c0_i32_0 = arith.constant 0 : i32
    return %arg0, %c0_i32 : i32, i32
  }
  func.func @transform_3(%arg0: i32) -> (i32, i32) {
    %c0_i32 = arith.constant 0 : i32
    %c0_i32_0 = arith.constant 0 : i32
    %c0_i32_1 = arith.constant 0 : i32
    return %c0_i32, %c0_i32_0 : i32, i32
  }
  func.func @transform_4(%arg0: i32) -> (i32, i32) {
    %c0_i32 = arith.constant 0 : i32
    %c0_i32_0 = arith.constant 0 : i32
    %c0_i32_1 = arith.constant 0 : i32
    return %c0_i32, %c0_i32_0 : i32, i32
  }
}

</mosaic_0001>

<llo_original>
// kernel: tpu_custom_call.1
$region0: #{tpu_custom_call.1}
  #allocation0 [shape = 'u32[]', space=smem, size = 0x4, offset = 0x4, fixed_abs, tag = 'smem constant byte address 0x4 - core index']
  #allocation1 [shape = 'u32[144,128]{1,0:T(1,128)}', space=vmem, size = 0x12000, scoped, tag = 'internal scratch']
  %s0 = inlined_call_operand.vmem [shape: f32[16,128], index: 0, kind: input, shape index: {}]
  %s1 = inlined_call_operand.hbm [shape: f32[16,128], index: 1, kind: input, shape index: {}]
  %s2 = inlined_call_operand.vmem [shape: s32[16,128], index: 2, kind: input, shape index: {}]
  %s3 = inlined_call_operand.hbm [shape: f32[8,128], index: 3, kind: output, shape index: {0}]
  %s4 = inlined_call_operand.hbm [shape: f32[8,128], index: 4, kind: output, shape index: {1}]
  %5 = xla_tuple %s3, %s4
  %s6 = sld [smem:[#allocation0]]
  $region38: #{tpu_custom_call.1} parent=0
    _
  %s8 = ssub.s32 1, %s6
  %s9 = scalar_select 0, %s8, %s6
  $region1: #{tpu_custom_call.1} parent=0
    #allocation2 [shape = 'u8[8192]{0}', space=vmem, size = 0x2000, scoped, tag = 'input window, operand 1, single buffered']
    #allocation3 [shape = 's32[1]{0}', space=sflag, size = 0x4, scoped, tag = 'scoped memory for tpu_custom_call.1']
    #allocation4 [shape = 's32[1]{0}', space=sflag, size = 0x4, scoped, tag = 'scoped memory for tpu_custom_call.1']
    #allocation5 [shape = 'u8[4096]{0}', space=vmem, size = 0x1000, scoped, tag = 'output window, operand 0, single buffered']
    #allocation6 [shape = 'u8[4096]{0}', space=vmem, size = 0x1000, scoped, tag = 'output window, operand 1, single buffered']
    #allocation7 [shape = 's32[1]{0}', space=sflag, size = 0x4, scoped, tag = 'scoped memory for tpu_custom_call.1']
    %10 = vsyncpa [#allocation3], 0
    %11 = vsyncpa [#allocation4], 0
    %12 = vsyncpa [#allocation7], 0
    // Predicated region
    $region2: #{tpu_custom_call.1} parent=1 // pred_check
      _
    $region3: #{tpu_custom_call.1} parent=1 // pred_check_branch
      %14 = sbr.rel (0) target = $region5
    $region4: #{tpu_custom_call.1} parent=1 // pred_region
      _
    $region5: #{tpu_custom_call.1} parent=1 // pred_fallthru
      _
    // Predicated region
    $region6: #{tpu_custom_call.1} parent=1 // pred_check
      _
    $region7: #{tpu_custom_call.1} parent=1 // pred_check_branch
      %16 = sbr.rel (0) target = $region9
    $region8: #{tpu_custom_call.1} parent=1 // pred_region
      %s18 = ssub.s32 256, 256
      %19 = vsyncadd [#allocation3], %s18
      %s20 = sshll.u32 [#allocation2], 4
      %s21 = int_to_ptr.vmem [resolvable:$true] %s20
      %26 = dma.hbm_to_vmem [thread:$0]  %s1, 256, %s21, [#allocation3], 128, 128, 8
    $region9: #{tpu_custom_call.1} parent=1 // pred_fallthru
      _
    // Predicated region
    $region10: #{tpu_custom_call.1} parent=1 // pred_check
      _
    $region11: #{tpu_custom_call.1} parent=1 // pred_check_branch
      %28 = sbr.rel (0) target = $region13
    $region12: #{tpu_custom_call.1} parent=1 // pred_region
      _
    $region13: #{tpu_custom_call.1} parent=1 // pred_fallthru
      _
    // Predicated region
    $region14: #{tpu_custom_call.1} parent=1 // pred_check
      _
    $region15: #{tpu_custom_call.1} parent=1 // pred_check_branch
      %30 = sbr.rel (0) target = $region17
    $region16: #{tpu_custom_call.1} parent=1 // pred_region
      %31 = dma.done [#allocation3], 256
    $region17: #{tpu_custom_call.1} parent=1 // pred_fallthru
      _
    %p32 = scmp.eq.s32.totalorder 0, 0
    // Predicated region
    $region18: #{tpu_custom_call.1} parent=1 // pred_check
      %p33 = pneg %p32
    $region19: #{tpu_custom_call.1} parent=1 // pred_check_branch
      %35 = sbr.rel (%p33) target = $region21
    $region20: #{tpu_custom_call.1} parent=1 // pred_region
      %36 = vst [vmem:[#allocation5] sm:$0xff] 0.0
      %37 = vst [vmem:[#allocation6] sm:$0xff] 0.0
    $region21: #{tpu_custom_call.1} parent=1 // pred_fallthru
      _
    %v38 = vld [vmem:[%s0] sm:$0xff]
    %v39 = vld [vmem:[%s0 + $0x8] sm:$0xff]
    %v40 = vld [vmem:[#allocation2] sm:$0xff]
    %v41 = vld [vmem:[#allocation2 + $0x8] sm:$0xff]
    %v42 = vsub.f32 %v38, %v40
    %v43 = vsub.f32 %v39, %v41
    %v44 = vand.u32 2147483647, %v42
    %v45 = vand.u32 2147483647, %v43
    %vm46 = vcmp.lt.f32.partialorder %v44, 1.0
    %vm47 = vcmp.lt.f32.partialorder %v45, 1.0
    %v48 = vmul.f32 %v42, 0.5
    %v49 = vmul.f32 %v43, 0.5
    %v50 = vmul.f32 %v48, %v42
    %v51 = vmul.f32 %v49, %v43
    %v52 = vsub.f32 %v44, 0.5
    %v53 = vsub.f32 %v45, 0.5
    %v54 = vsel %vm46, %v50, %v52
    %v55 = vsel %vm47, %v51, %v53
    %v56 = vld [vmem:[%s2] sm:$0xff]
    %v57 = vld [vmem:[%s2 + $0x8] sm:$0xff]
    %vm58 = vcmp.ne.s32.totalorder %v56, 0
    %vm59 = vcmp.ne.s32.totalorder %v57, 0
    %v60 = vld [vmem:[#allocation5] sm:$0xff]
    %v61 = vsel %vm58, %v54, 0.0
    %v62 = vsel %vm59, %v55, 0.0
    %v63 = vadd.f32 %v61, %v62
    %v64 = vadd.f32 %v60, %v63
    %65 = vst [vmem:[#allocation5] sm:$0xff] %v64
    %v66 = vld [vmem:[#allocation6] sm:$0xff]
    %v67 = vsel %vm58, 1.0, 0.0
    %v68 = vsel %vm59, 1.0, 0.0
    %v69 = vadd.f32 %v67, %v68
    %v70 = vadd.f32 %v66, %v69
    %71 = vst [vmem:[#allocation6] sm:$0xff] %v70
    // Predicated region
    $region22: #{tpu_custom_call.1} parent=1 // pred_check
      _
    $region23: #{tpu_custom_call.1} parent=1 // pred_check_branch
      %73 = sbr.rel (0) target = $region25
    $region24: #{tpu_custom_call.1} parent=1 // pred_region
      %s75 = ssub.s32 128, 128
      %76 = vsyncadd [#allocation4], %s75
      %s78 = sshll.u32 [#allocation5], 4
      %s79 = int_to_ptr.vmem [resolvable:$true] %s78
      %81 = dma.vmem_to_hbm [thread:$0]  %s79, 128, %s3, [#allocation4]
    $region25: #{tpu_custom_call.1} parent=1 // pred_fallthru
      _
    // Predicated region
    $region26: #{tpu_custom_call.1} parent=1 // pred_check
      _
    $region27: #{tpu_custom_call.1} parent=1 // pred_check_branch
      %83 = sbr.rel (0) target = $region29
    $region28: #{tpu_custom_call.1} parent=1 // pred_region
      %s85 = ssub.s32 128, 128
      %86 = vsyncadd [#allocation7], %s85
      %s88 = sshll.u32 [#allocation6], 4
      %s89 = int_to_ptr.vmem [resolvable:$true] %s88
      %91 = dma.vmem_to_hbm [thread:$0]  %s89, 128, %s4, [#allocation7]
    $region29: #{tpu_custom_call.1} parent=1 // pred_fallthru
      _
    // Predicated region
    $region30: #{tpu_custom_call.1} parent=1 // pred_check
      _
    $region31: #{tpu_custom_call.1} parent=1 // pred_check_branch
      %93 = sbr.rel (0) target = $region33
    $region32: #{tpu_custom_call.1} parent=1 // pred_region
      %94 = dma.done [#allocation4], 128
    $region33: #{tpu_custom_call.1} parent=1 // pred_fallthru
      _
    // Predicated region
    $region34: #{tpu_custom_call.1} parent=1 // pred_check
      _
    $region35: #{tpu_custom_call.1} parent=1 // pred_check_branch
      %96 = sbr.rel (0) target = $region37
    $region36: #{tpu_custom_call.1} parent=1 // pred_region
      %97 = dma.done [#allocation7], 128
    $region37: #{tpu_custom_call.1} parent=1 // pred_fallthru
      _
    %98 = vsyncpa [#allocation3], 1
    %99 = vsyncpa [#allocation4], 1
    %100 = vsyncpa [#allocation7], 1

</llo_original>
